<compile_context>
chip_gen: v6e
topology: v6e:2x2x1
jax: 0.10.0
libtpu: 0.0.40
codegen_flags: <defaults>
</compile_context>

<pallas_src>
import functools

import jax
import jax.numpy as jnp
from jax.experimental import pallas as pl
from jax.experimental.pallas import tpu as pltpu


def _round_up(x, m):
    return ((x + m - 1) // m) * m


def _choose_tile_m(bn):
    """Row-tile size.  Big tiles amortize per-step overhead; once the batch is
    large enough, keep >= 2 grid steps so v7x's second TensorCore gets work."""
    if bn <= 16:
        return max(8, _round_up(bn, 8))
    if bn >= 2048:
        return 1024
    return min(1024, _round_up((bn + 1) // 2, 8))


# ----------------------------------------------------------------------------
# Pallas kernel: fused 2-layer softplus MLP + fused mu/logvar heads +
# gaussian reparameterization, one lane-dense output slab per row tile.
# ----------------------------------------------------------------------------
def aux_decoder_kernel(h0_ref, w1_ref, w23_ref, c_ref, out_ref):
    H = w1_ref.shape[1]          # hidden width (h_dim)
    HEADW = out_ref.shape[1]     # 4 * noise_dim, lane-dense
    KPAD = h0_ref.shape[1]       # slab width

    b2 = c_ref[:, 0:H]
    bh = c_ref[:, H:H + HEADW]
    half_mask = c_ref[:, H + HEADW:H + 2 * HEADW]      # 0.5 on the noise lanes
    one_mask = c_ref[:, H + 2 * HEADW:H + 3 * HEADW]   # 1.0 on the noise lanes

    def softplus(v):
        # Stable softplus without logaddexp's inf/nan special-case selects.
        return jnp.maximum(v, 0.0) + jnp.log1p(jnp.exp(-jnp.abs(v)))

    h0 = h0_ref[...]

    # fc layer 1: 2*x-1 and b1 are folded into W1; the eps lanes of the slab
    # hit all-zero W1 rows, so they do not affect the result.
    h = softplus(jnp.dot(h0, w1_ref[...], preferred_element_type=jnp.float32))

    # fc layer 2 (use_nonlinearity_output=True)
    h = softplus(jnp.dot(h, w23_ref[:, 0:H],
                         preferred_element_type=jnp.float32) + b2)

    # Fused heads: one matmul -> [mu | logvar | logvar | mu]
    head4 = jnp.dot(h, w23_ref[:, H:H + HEADW],
                    preferred_element_type=jnp.float32) + bh

    # Swap lane halves -> [logvar | mu | mu | logvar]: puts logvar under the
    # noise (last-nd) lanes.  A half rotation is direction-agnostic, so a
    # concat of the two halves is exact and lowers cleanly everywhere.
    half = HEADW // 2
    swapped = jnp.concatenate([head4[:, half:], head4[:, :half]], axis=1)

    # eps sits in the last noise_dim lanes of the slab; everything else inside
    # this window is zeroed by one_mask.  half_mask gates the exponent so the
    # mu/logvar lanes see exp(0) = 1 (no inf * 0 -> nan).
    eps_blk = h0[:, KPAD - HEADW:KPAD]

    # out = [mu | logvar | logvar | mu + eps * exp(0.5 * logvar)]
    out_ref[...] = head4 + (one_mask * eps_blk) * jnp.exp(half_mask * swapped)


# ----------------------------------------------------------------------------
# Wrapper
# ----------------------------------------------------------------------------
@functools.partial(jax.jit, static_argnames=("nz",))
def aux_decoder_forward(x, z, eps, params, nz=1):
    """x: (B, C, H, W) image in [0,1]; z: (B*nz, z_dim); eps: (B*nz, noise_dim)."""
    batch_size = x.shape[0]
    input_dim = x.shape[1] * x.shape[2] * x.shape[3]

    w1, w23, c = params["w1"], params["w23"], params["c"]
    k_pad, h_dim = w1.shape
    headw = w23.shape[1] - h_dim
    nd = headw // 4

    bn = z.shape[0]                      # batch_size * nz
    z_dim = z.shape[1]
    assert bn == batch_size * nz
    assert eps.shape == (bn, nd)

    # Raw flattened image: the 2*x-1 affine and b1 are folded into W1.
    x_flat = x.reshape(batch_size, input_dim).astype(jnp.float32)
    if nz > 1:
        # TODO(synk): for large nz, stream x through its own BlockSpec whose
        # index_map divides the row tile by nz instead of materializing the
        # nz-replicated copy in HBM.
        x_flat = jnp.broadcast_to(x_flat[:, None, :], (batch_size, nz, input_dim))
        x_flat = x_flat.reshape(bn, input_dim)

    # One activation slab per row: [x | z | 1 | 0-pad | eps], width k_pad.
    # The constant-1 lane carries b1 (folded into W1); the eps lanes line up
    # with zero W1 rows and with the noise lanes of the output tile.
    pad = k_pad - (input_dim + z_dim + 1 + nd)
    parts = [x_flat, z.astype(jnp.float32), jnp.ones((bn, 1), jnp.float32)]
    if pad:
        parts.append(jnp.zeros((bn, pad), jnp.float32))
    parts.append(eps.astype(jnp.float32))
    h0 = jnp.concatenate(parts, axis=1)

    tile_m = _choose_tile_m(bn)
    bn_pad = _round_up(bn, tile_m)
    if bn_pad != bn:
        h0 = jnp.pad(h0, ((0, bn_pad - bn), (0, 0)))
    grid = (bn_pad // tile_m,)

    # NOTE: pipeline depth left at the default double-buffering; with resident
    # weights the streamed working set is a few hundred KB even at tile_m=1024.
    out = pl.pallas_call(
        aux_decoder_kernel,
        out_shape=jax.ShapeDtypeStruct((bn_pad, headw), jnp.float32),
        grid_spec=pltpu.PrefetchScalarGridSpec(
            num_scalar_prefetch=0,
            grid=grid,
            in_specs=[
                pl.BlockSpec((tile_m, k_pad), lambda i: (i, 0)),         # h0 (streamed)
                pl.BlockSpec((k_pad, h_dim), lambda i: (0, 0)),          # W1 (resident)
                pl.BlockSpec((h_dim, h_dim + headw), lambda i: (0, 0)),  # [W2 | Whead]
                pl.BlockSpec((1, h_dim + 3 * headw), lambda i: (0, 0)),  # [b2|bh|masks]
            ],
            out_specs=pl.BlockSpec((tile_m, headw), lambda i: (i, 0)),
        ),
        compiler_params=pltpu.CompilerParams(
            dimension_semantics=("parallel",)),
    )(h0, w1, w23, c)

    mu = out[:bn, 0:nd]
    logvar = out[:bn, nd:2 * nd]
    noise = out[:bn, 3 * nd:4 * nd]
    return noise, mu, logvar


# ----------------------------------------------------------------------------
# Parameter packing for the fused kernel layout.
# ----------------------------------------------------------------------------
def pack_params(w1, b1, w2, b2, wmu, bmu, wlv, blv, *, input_dim, z_dim):
    """Pack raw (in_features, out_features) Linear params into the fused
    layout.  Folds the 2*x-1 input affine and b1 into the padded W1 slab."""
    h_dim = w2.shape[0]
    nd = wmu.shape[1]
    headw = 4 * nd
    k_pad = _round_up(input_dim + z_dim + 1 + nd, 128)

    assert h_dim % 128 == 0, "packing assumes h_dim is a multiple of 128"
    assert headw % 128 == 0, "packing assumes 4*noise_dim is a multiple of 128"
    assert nd <= 128, "packing assumes noise_dim <= 128"
    assert headw <= k_pad, "head tile must fit inside the slab width"

    f32 = lambda a: jnp.asarray(a, jnp.float32)
    w1, b1, w2, b2 = f32(w1), f32(b1), f32(w2), f32(b2)
    wmu, bmu, wlv, blv = f32(wmu), f32(bmu), f32(wlv), f32(blv)

    w1x = w1[:input_dim]
    w1z = w1[input_dim:input_dim + z_dim]
    w1p = jnp.zeros((k_pad, h_dim), jnp.float32)
    w1p = w1p.at[:input_dim].set(2.0 * w1x)                           # fold 2*x
    w1p = w1p.at[input_dim:input_dim + z_dim].set(w1z)
    w1p = w1p.at[input_dim + z_dim].set(b1 - jnp.sum(w1x, axis=0))    # fold -1, b1
    # rows [input_dim+z_dim+1, k_pad) stay exactly zero (pad + eps lanes).

    # [W2 | Wmu | Wlv | Wlv | Wmu]: noise comes out in the last nd lanes.
    w23 = jnp.concatenate([w2, wmu, wlv, wlv, wmu], axis=1)

    bh = jnp.concatenate([bmu, blv, blv, bmu])
    half_mask = jnp.zeros((headw,), jnp.float32).at[headw - nd:].set(0.5)
    one_mask = jnp.zeros((headw,), jnp.float32).at[headw - nd:].set(1.0)
    c = jnp.concatenate([b2, bh, half_mask, one_mask])[None, :]
    return dict(w1=w1p, w23=w23, c=c)


# ----------------------------------------------------------------------------
# Deterministic parameter init (PyTorch nn.Linear style: U(-1/sqrt(fan_in), .))
# Weights stored as (in_features, out_features) so the kernel does x @ W.
# ----------------------------------------------------------------------------
def init_params(key, input_dim, z_dim, h_dim, noise_dim):
    def linear(key, fan_in, fan_out):
        kw, kb = jax.random.split(key)
        bound = 1.0 / jnp.sqrt(float(fan_in))
        w = jax.random.uniform(kw, (fan_in, fan_out), jnp.float32, -bound, bound)
        b = jax.random.uniform(kb, (fan_out,), jnp.float32, -bound, bound)
        return w, b

    k1, k2, k3, k4 = jax.random.split(key, 4)
    w1, b1 = linear(k1, input_dim + z_dim, h_dim)   # fc layer 1
    w2, b2 = linear(k2, h_dim, h_dim)               # fc layer 2
    wmu, bmu = linear(k3, h_dim, noise_dim)         # reparam mean head
    wlv, blv = linear(k4, h_dim, noise_dim)         # reparam logvar head
    raw = dict(w1=w1, b1=b1, w2=w2, b2=b2, wmu=wmu, bmu=bmu, wlv=wlv, blv=blv)
    packed = pack_params(w1, b1, w2, b2, wmu, bmu, wlv, blv,
                         input_dim=input_dim, z_dim=z_dim)
    return packed, raw


# ----------------------------------------------------------------------------
# Pure-JAX reference on the RAW (unpacked) params: validates both the packing
# (2x-1 / b1 folding, head layout) and the kernel itself.
# ----------------------------------------------------------------------------
def reference_forward(x, z, eps, raw, *, nz=1):
    batch_size = x.shape[0]
    z_dim = z.shape[1]
    input_dim = raw["w1"].shape[0] - z_dim

    inp = 2.0 * x.reshape(batch_size, input_dim).astype(jnp.float32) - 1.0
    if nz > 1:
        inp = jnp.broadcast_to(inp[:, None, :], (batch_size, nz, input_dim))
        inp = inp.reshape(batch_size * nz, input_dim)
    h1 = jnp.concatenate([inp, z.astype(jnp.float32)], axis=1)
    h = jax.nn.softplus(h1 @ raw["w1"] + raw["b1"])
    h = jax.nn.softplus(h @ raw["w2"] + raw["b2"])
    mu = h @ raw["wmu"] + raw["bmu"]
    lv = h @ raw["wlv"] + raw["blv"]
    noise = mu + eps * jnp.exp(0.5 * lv)
    return noise, mu, lv


if __name__ == "__main__":
    # Small shapes consistent with the module's forward (image -> flat MLP).
    B, C, H, W = 8, 1, 8, 8          # input_dim = 64
    input_dim = C * H * W
    z_dim, h_dim, noise_dim, nz = 16, 128, 32, 1

    key = jax.random.PRNGKey(0)
    kx, kz, keps, kp = jax.random.split(key, 4)

    x = jax.random.uniform(kx, (B, C, H, W), jnp.float32)            # image in [0,1]
    z = jax.random.normal(kz, (B * nz, z_dim), jnp.float32)
    eps = jax.random.normal(keps, (B * nz, noise_dim), jnp.float32)  # reparam noise
    packed, raw = init_params(kp, input_dim, z_dim, h_dim, noise_dim)

    noise, mu, logvar = aux_decoder_forward(x, z, eps, packed, nz=nz)
    jax.block_until_ready((noise, mu, logvar))

    # Correctness vs. pure-JAX reference computed from the raw parameters.
    r_noise, r_mu, r_lv = reference_forward(x, z, eps, raw, nz=nz)

    assert noise.shape == (B * nz, noise_dim)
    assert mu.shape == (B * nz, noise_dim)
    assert logvar.shape == (B * nz, noise_dim)
    assert bool(jnp.all(jnp.isfinite(noise)))
    tol = 2e-3
    assert bool(jnp.max(jnp.abs(noise - r_noise)) <= tol)
    assert bool(jnp.max(jnp.abs(mu - r_mu)) <= tol)
    assert bool(jnp.max(jnp.abs(logvar - r_lv)) <= tol)
    print("KERNEL_OK")
</pallas_src>

<mosaic_0001>
module attributes {stable_mosaic.version = 11 : i64} {
  func.func @aux_decoder_kernel(%arg0: i32, %arg1: memref<8x128xf32, #tpu.memory_space<vmem>>, %arg2: memref<128x128xf32, #tpu.memory_space<vmem>>, %arg3: memref<128x256xf32, #tpu.memory_space<vmem>>, %arg4: memref<1x512xf32, #tpu.memory_space<vmem>>, %arg5: memref<8x128xf32, #tpu.memory_space<vmem>>) attributes {dimension_semantics = [#tpu.dimension_semantics<parallel>], iteration_bounds = array<i64: 1>, scalar_prefetch = 0 : i64, scratch_operands = 0 : i64, tpu.core_type = #tpu.core_type<tc>, window_params = [{transform_indices = @transform_0, window_bounds = array<i64: 8, 128>}, {pipeline_mode = #tpu.pipeline_mode<synchronous>, transform_indices = @transform_1, window_bounds = array<i64: 128, 128>}, {pipeline_mode = #tpu.pipeline_mode<synchronous>, transform_indices = @transform_2, window_bounds = array<i64: 128, 256>}, {pipeline_mode = #tpu.pipeline_mode<synchronous>, transform_indices = @transform_3, window_bounds = array<i64: 1, 512>}, {transform_indices = @transform_4, window_bounds = array<i64: 8, 128>}]} {
    %c0 = arith.constant 0 : index
    %c0_0 = arith.constant 0 : index
    %0 = vector.load %arg4[%c0, %c0_0] : memref<1x512xf32, #tpu.memory_space<vmem>>, vector<1x128xf32>
    %c0_1 = arith.constant 0 : index
    %c128 = arith.constant 128 : index
    %1 = vector.load %arg4[%c0_1, %c128] : memref<1x512xf32, #tpu.memory_space<vmem>>, vector<1x128xf32>
    %c0_2 = arith.constant 0 : index
    %c256 = arith.constant 256 : index
    %2 = vector.load %arg4[%c0_2, %c256] : memref<1x512xf32, #tpu.memory_space<vmem>>, vector<1x128xf32>
    %c0_3 = arith.constant 0 : index
    %c384 = arith.constant 384 : index
    %3 = vector.load %arg4[%c0_3, %c384] : memref<1x512xf32, #tpu.memory_space<vmem>>, vector<1x128xf32>
    %c0_4 = arith.constant 0 : index
    %c0_5 = arith.constant 0 : index
    %4 = vector.load %arg1[%c0_4, %c0_5] : memref<8x128xf32, #tpu.memory_space<vmem>>, vector<8x128xf32>
    %c0_6 = arith.constant 0 : index
    %c0_7 = arith.constant 0 : index
    %5 = vector.load %arg2[%c0_6, %c0_7] : memref<128x128xf32, #tpu.memory_space<vmem>>, vector<128x128xf32>
    %cst = arith.constant dense<0.000000e+00> : vector<8x128xf32>
    %6 = tpu.matmul %4, %5, %cst {dimension_numbers = #tpu.dot_dimension_numbers<[1], [0], [0], [1], [0, 0, 1, 1], [], []>} : vector<8x128xf32>, vector<128x128xf32>, vector<8x128xf32> -> vector<8x128xf32>
    %cst_8 = arith.constant 0.000000e+00 : f32
    %7 = vector.broadcast %cst_8 : f32 to vector<8x128xf32>
    %8 = arith.maximumf %6, %7 : vector<8x128xf32>
    %9 = math.absf %6 : vector<8x128xf32>
    %cst_9 = arith.constant 0.000000e+00 : f32
    %10 = vector.broadcast %cst_9 : f32 to vector<8x128xf32>
    %11 = arith.subf %10, %9 : vector<8x128xf32>
    %12 = math.exp %11 : vector<8x128xf32>
    %13 = math.log1p %12 : vector<8x128xf32>
    %14 = arith.addf %8, %13 : vector<8x128xf32>
    %c0_10 = arith.constant 0 : index
    %c0_11 = arith.constant 0 : index
    %15 = vector.load %arg3[%c0_10, %c0_11] : memref<128x256xf32, #tpu.memory_space<vmem>>, vector<128x128xf32>
    %cst_12 = arith.constant dense<0.000000e+00> : vector<8x128xf32>
    %16 = tpu.matmul %14, %15, %cst_12 {dimension_numbers = #tpu.dot_dimension_numbers<[1], [0], [0], [1], [0, 0, 1, 1], [], []>} : vector<8x128xf32>, vector<128x128xf32>, vector<8x128xf32> -> vector<8x128xf32>
    %17 = vector.broadcast %0 : vector<1x128xf32> to vector<8x128xf32>
    %18 = arith.addf %16, %17 : vector<8x128xf32>
    %cst_13 = arith.constant 0.000000e+00 : f32
    %19 = vector.broadcast %cst_13 : f32 to vector<8x128xf32>
    %20 = arith.maximumf %18, %19 : vector<8x128xf32>
    %21 = math.absf %18 : vector<8x128xf32>
    %cst_14 = arith.constant 0.000000e+00 : f32
    %22 = vector.broadcast %cst_14 : f32 to vector<8x128xf32>
    %23 = arith.subf %22, %21 : vector<8x128xf32>
    %24 = math.exp %23 : vector<8x128xf32>
    %25 = math.log1p %24 : vector<8x128xf32>
    %26 = arith.addf %20, %25 : vector<8x128xf32>
    %c0_15 = arith.constant 0 : index
    %c128_16 = arith.constant 128 : index
    %27 = vector.load %arg3[%c0_15, %c128_16] : memref<128x256xf32, #tpu.memory_space<vmem>>, vector<128x128xf32>
    %cst_17 = arith.constant dense<0.000000e+00> : vector<8x128xf32>
    %28 = tpu.matmul %26, %27, %cst_17 {dimension_numbers = #tpu.dot_dimension_numbers<[1], [0], [0], [1], [0, 0, 1, 1], [], []>} : vector<8x128xf32>, vector<128x128xf32>, vector<8x128xf32> -> vector<8x128xf32>
    %29 = vector.broadcast %1 : vector<1x128xf32> to vector<8x128xf32>
    %30 = arith.addf %28, %29 : vector<8x128xf32>
    %31 = vector.extract_strided_slice %30 {offsets = [0, 64], sizes = [8, 64], strides = [1, 1]} : vector<8x128xf32> to vector<8x64xf32>
    %32 = vector.extract_strided_slice %30 {offsets = [0, 0], sizes = [8, 64], strides = [1, 1]} : vector<8x128xf32> to vector<8x64xf32>
    %33 = tpu.concatenate %31, %32 in 1 : vector<8x64xf32>, vector<8x64xf32> -> vector<8x128xf32>
    %34 = vector.broadcast %3 : vector<1x128xf32> to vector<8x128xf32>
    %35 = arith.mulf %34, %4 : vector<8x128xf32>
    %36 = vector.broadcast %2 : vector<1x128xf32> to vector<8x128xf32>
    %37 = arith.mulf %36, %33 : vector<8x128xf32>
    %38 = math.exp %37 : vector<8x128xf32>
    %39 = arith.mulf %35, %38 : vector<8x128xf32>
    %40 = arith.addf %30, %39 : vector<8x128xf32>
    %c0_18 = arith.constant 0 : index
    %c0_19 = arith.constant 0 : index
    %41 = vector.load %arg5[%c0_18, %c0_19] : memref<8x128xf32, #tpu.memory_space<vmem>>, vector<8x128xf32>
    tpu.vector_store %arg5[%c0_18, %c0_19], %40 {strides = array<i32>} : memref<8x128xf32, #tpu.memory_space<vmem>>, vector<8x128xf32>,
    return
  }
  func.func @transform_0(%arg0: i32) -> (i32, i32) {
    %c0_i32 = arith.constant 0 : i32
    %c0_i32_0 = arith.constant 0 : i32
    return %arg0, %c0_i32 : i32, i32
  }
  func.func @transform_1(%arg0: i32) -> (i32, i32) {
    %c0_i32 = arith.constant 0 : i32
    %c0_i32_0 = arith.constant 0 : i32
    %c0_i32_1 = arith.constant 0 : i32
    return %c0_i32, %c0_i32_0 : i32, i32
  }
  func.func @transform_2(%arg0: i32) -> (i32, i32) {
    %c0_i32 = arith.constant 0 : i32
    %c0_i32_0 = arith.constant 0 : i32
    %c0_i32_1 = arith.constant 0 : i32
    return %c0_i32, %c0_i32_0 : i32, i32
  }
  func.func @transform_3(%arg0: i32) -> (i32, i32) {
    %c0_i32 = arith.constant 0 : i32
    %c0_i32_0 = arith.constant 0 : i32
    %c0_i32_1 = arith.constant 0 : i32
    return %c0_i32, %c0_i32_0 : i32, i32
  }
  func.func @transform_4(%arg0: i32) -> (i32, i32) {
    %c0_i32 = arith.constant 0 : i32
    %c0_i32_0 = arith.constant 0 : i32
    return %arg0, %c0_i32 : i32, i32
  }
}

</mosaic_0001>

<llo_original>
// kernel: aux_decoder_forward.1
$region0: #{aux_decoder_forward.1}
  #allocation0 [shape = 'u32[]', space=smem, size = 0x4, offset = 0x4, fixed_abs, tag = 'smem constant byte address 0x4 - core index']
  #allocation1 [shape = 'u32[144,128]{1,0:T(1,128)}', space=vmem, size = 0x12000, scoped, tag = 'internal scratch']
  %s0 = inlined_call_operand.vmem [shape: f32[8,128], index: 0, kind: input, shape index: {}]
  %s1 = inlined_call_operand.vmem [shape: f32[128,128], index: 1, kind: input, shape index: {}]
  %s2 = inlined_call_operand.hbm [shape: f32[128,256], index: 2, kind: input, shape index: {}]
  %s3 = inlined_call_operand.vmem [shape: f32[1,512], index: 3, kind: input, shape index: {}]
  %s4 = inlined_call_operand.vmem [shape: f32[8,128], index: 4, kind: output, shape index: {}]
  %s5 = sld [smem:[#allocation0]]
  $region30: #{aux_decoder_forward.1} parent=0
    _
  %s7 = ssub.s32 1, %s5
  %s8 = scalar_select 0, %s7, %s5
  $region1: #{aux_decoder_forward.1} parent=0
    #allocation2 [shape = 'u8[131072]{0}', space=vmem, size = 0x20000, scoped, tag = 'input window, operand 2, single buffered']
    #allocation3 [shape = 's32[1]{0}', space=sflag, size = 0x4, scoped, tag = 'scoped memory for aux_decoder_forward.1']
    %9 = vsyncpa [#allocation3], 0
    // Predicated region
    $region2: #{aux_decoder_forward.1} parent=1 // pred_check
      _
    $region3: #{aux_decoder_forward.1} parent=1 // pred_check_branch
      %11 = sbr.rel (0) target = $region5
    $region4: #{aux_decoder_forward.1} parent=1 // pred_region
      _
    $region5: #{aux_decoder_forward.1} parent=1 // pred_fallthru
      _
    // Predicated region
    $region6: #{aux_decoder_forward.1} parent=1 // pred_check
      _
    $region7: #{aux_decoder_forward.1} parent=1 // pred_check_branch
      %13 = sbr.rel (0) target = $region9
    $region8: #{aux_decoder_forward.1} parent=1 // pred_region
      _
    $region9: #{aux_decoder_forward.1} parent=1 // pred_fallthru
      _
    // Predicated region
    $region10: #{aux_decoder_forward.1} parent=1 // pred_check
      _
    $region11: #{aux_decoder_forward.1} parent=1 // pred_check_branch
      %15 = sbr.rel (0) target = $region13
    $region12: #{aux_decoder_forward.1} parent=1 // pred_region
      %s17 = ssub.s32 4096, 4096
      %18 = vsyncadd [#allocation3], %s17
      %s19 = sshll.u32 [#allocation2], 4
      %s20 = int_to_ptr.vmem [resolvable:$true] %s19
      %25 = dma.hbm_to_vmem [thread:$0]  %s2, 4096, %s20, [#allocation3], 256, 256, 16
    $region13: #{aux_decoder_forward.1} parent=1 // pred_fallthru
      _
    // Predicated region
    $region14: #{aux_decoder_forward.1} parent=1 // pred_check
      _
    $region15: #{aux_decoder_forward.1} parent=1 // pred_check_branch
      %27 = sbr.rel (0) target = $region17
    $region16: #{aux_decoder_forward.1} parent=1 // pred_region
      _
    $region17: #{aux_decoder_forward.1} parent=1 // pred_fallthru
      _
    // Predicated region
    $region18: #{aux_decoder_forward.1} parent=1 // pred_check
      _
    $region19: #{aux_decoder_forward.1} parent=1 // pred_check_branch
      %29 = sbr.rel (0) target = $region21
    $region20: #{aux_decoder_forward.1} parent=1 // pred_region
      %30 = dma.done [#allocation3], 4096
    $region21: #{aux_decoder_forward.1} parent=1 // pred_fallthru
      _
    %v31 = vld [vmem:[%s3] sm:$0x1]
    %v32 = vld [vmem:[%s3 + $0x1] sm:$0x1]
    %v33 = vld [vmem:[%s3 + $0x2] sm:$0x1]
    %v34 = vld [vmem:[%s3 + $0x3] sm:$0x1]
    %v35 = vld [vmem:[%s0] sm:$0xff]
    %v36 = vld [vmem:[%s1] sm:$0xff]
    %v37 = vld [vmem:[%s1 + $0x8] sm:$0xff]
    %v38 = vld [vmem:[%s1 + $0x10] sm:$0xff]
    %v39 = vld [vmem:[%s1 + $0x18] sm:$0xff]
    %v40 = vld [vmem:[%s1 + $0x20] sm:$0xff]
    %v41 = vld [vmem:[%s1 + $0x28] sm:$0xff]
    %v42 = vld [vmem:[%s1 + $0x30] sm:$0xff]
    %v43 = vld [vmem:[%s1 + $0x38] sm:$0xff]
    %v44 = vld [vmem:[%s1 + $0x40] sm:$0xff]
    %v45 = vld [vmem:[%s1 + $0x48] sm:$0xff]
    %v46 = vld [vmem:[%s1 + $0x50] sm:$0xff]
    %v47 = vld [vmem:[%s1 + $0x58] sm:$0xff]
    %v48 = vld [vmem:[%s1 + $0x60] sm:$0xff]
    %v49 = vld [vmem:[%s1 + $0x68] sm:$0xff]
    %v50 = vld [vmem:[%s1 + $0x70] sm:$0xff]
    %v51 = vld [vmem:[%s1 + $0x78] sm:$0xff]
    %52 = vmatprep.subr.mxu0 0.0
    %53 = vmatpush1.msra.mxu0 %v51
    %54 = vmatprep.subr.mxu0 0.0
    %55 = vmatpush1.msra.mxu0 %v50
    %56 = vmatprep.subr.mxu0 0.0
    %57 = vmatpush1.msra.mxu0 %v49
    %58 = vmatprep.subr.mxu0 0.0
    %59 = vmatpush1.msra.mxu0 %v48
    %60 = vmatprep.subr.mxu0 0.0
    %61 = vmatpush1.msra.mxu0 %v47
    %62 = vmatprep.subr.mxu0 0.0
    %63 = vmatpush1.msra.mxu0 %v46
    %64 = vmatprep.subr.mxu0 0.0
    %65 = vmatpush1.msra.mxu0 %v45
    %66 = vmatprep.subr.mxu0 0.0
    %67 = vmatpush1.msra.mxu0 %v44
    %68 = vmatprep.subr.mxu0 0.0
    %69 = vmatpush1.msra.mxu0 %v43
    %70 = vmatprep.subr.mxu0 0.0
    %71 = vmatpush1.msra.mxu0 %v42
    %72 = vmatprep.subr.mxu0 0.0
    %73 = vmatpush1.msra.mxu0 %v41
    %74 = vmatprep.subr.mxu0 0.0
    %75 = vmatpush1.msra.mxu0 %v40
    %76 = vmatprep.subr.mxu0 0.0
    %77 = vmatpush1.msra.mxu0 %v39
    %78 = vmatprep.subr.mxu0 0.0
    %79 = vmatpush1.msra.mxu0 %v38
    %80 = vmatprep.subr.mxu0 0.0
    %81 = vmatpush1.msra.mxu0 %v37
    %82 = vmatprep.subr.mxu0 0.0
    %83 = vmatpush1.msra.mxu0 %v36
    %84 = vmatprep.subr.mxu0 0.0
    %85 = vmatpush2.msra.mxu0 0.0
    %86 = vmatprep.subr.mxu0 0.0
    %87 = vmatpush2.msra.mxu0 0.0
    %88 = vmatprep.subr.mxu0 0.0
    %89 = vmatpush2.msra.mxu0 0.0
    %90 = vmatprep.subr.mxu0 0.0
    %91 = vmatpush2.msra.mxu0 0.0
    %92 = vmatprep.subr.mxu0 0.0
    %93 = vmatpush2.msra.mxu0 0.0
    %94 = vmatprep.subr.mxu0 0.0
    %95 = vmatpush2.msra.mxu0 0.0
    %96 = vmatprep.subr.mxu0 0.0
    %97 = vmatpush2.msra.mxu0 0.0
    %98 = vmatprep.subr.mxu0 0.0
    %99 = vmatpush2.msra.mxu0 0.0
    %100 = vmatprep.subr.mxu0 0.0
    %101 = vmatpush2.msra.mxu0 0.0
    %102 = vmatprep.subr.mxu0 0.0
    %103 = vmatpush2.msra.mxu0 0.0
    %104 = vmatprep.subr.mxu0 0.0
    %105 = vmatpush2.msra.mxu0 0.0
    %106 = vmatprep.subr.mxu0 0.0
    %107 = vmatpush2.msra.mxu0 0.0
    %108 = vmatprep.subr.mxu0 0.0
    %109 = vmatpush2.msra.mxu0 0.0
    %110 = vmatprep.subr.mxu0 0.0
    %111 = vmatpush2.msra.mxu0 0.0
    %112 = vmatprep.subr.mxu0 0.0
    %113 = vmatpush2.msra.mxu0 0.0
    %114 = vmatprep.subr.mxu0 0.0
    %115 = vmatpush2.msra.mxu0 0.0
    %116 = vmatprep.mubr.f32.mxu0 0.0
    %117 = vmatmul.mubr.f32.gmra.mxu0 %v35
    %v118 = vpop.f32.mrf.mxu0
    %v119 = vadd.f32 0.0, %v118
    %v120 = vpop.f32.mrf.mxu0
    %121 = vdwg.mxu0
    %v122 = vmax.f32 %v119, 0.0
    %v123 = vand.u32 2147483647, %v119
    %v124 = vsub.f32 0.0, %v123
    %v125 = vmul.f32 %v124, 1.442695
    %v126 = vpow.pop %v125
    %v127 = vadd.f32 %v126, 1.0
    %v128 = vlog2.pop %v127
    %v129 = vmul.f32 %v128, 0.6931472
    %v130 = vmul.f32 -0.5, %v126
    %v131 = vadd.f32 %v130, 1.0
    %v132 = vmul.f32 %v131, %v126
    %v133 = vand.u32 2147483647, %v126
    %vm134 = vcmp.lt.f32.partialorder %v133, 0.0004427343
    %v135 = vsel %vm134, %v132, %v129
    %v136 = vadd.f32 %v122, %v135
    %v137 = vld [vmem:[#allocation2] sm:$0xff]
    %v138 = vld [vmem:[#allocation2 + $0x10] sm:$0xff]
    %v139 = vld [vmem:[#allocation2 + $0x20] sm:$0xff]
    %v140 = vld [vmem:[#allocation2 + $0x30] sm:$0xff]
    %v141 = vld [vmem:[#allocation2 + $0x40] sm:$0xff]
    %v142 = vld [vmem:[#allocation2 + $0x50] sm:$0xff]
    %v143 = vld [vmem:[#allocation2 + $0x60] sm:$0xff]
    %v144 = vld [vmem:[#allocation2 + $0x70] sm:$0xff]
    %v145 = vld [vmem:[#allocation2 + $0x80] sm:$0xff]
    %v146 = vld [vmem:[#allocation2 + $0x90] sm:$0xff]
    %v147 = vld [vmem:[#allocation2 + $0xa0] sm:$0xff]
    %v148 = vld [vmem:[#allocation2 + $0xb0] sm:$0xff]
    %v149 = vld [vmem:[#allocation2 + $0xc0] sm:$0xff]
    %v150 = vld [vmem:[#allocation2 + $0xd0] sm:$0xff]
    %v151 = vld [vmem:[#allocation2 + $0xe0] sm:$0xff]
    %v152 = vld [vmem:[#allocation2 + $0xf0] sm:$0xff]
    %v154 = vlaneseq
    %v155 = vshrl.u32 %v154, 7
    %v156 = vsub.s32 0, %v155
    %v157 = vrot.slane %v31, %v156
    %159 = vmatprep.subr.mxu0 0.0
    %160 = vmatpush1.msra.mxu0 %v152
    %161 = vmatprep.subr.mxu0 0.0
    %162 = vmatpush1.msra.mxu0 %v151
    %163 = vmatprep.subr.mxu0 0.0
    %164 = vmatpush1.msra.mxu0 %v150
    %165 = vmatprep.subr.mxu0 0.0
    %166 = vmatpush1.msra.mxu0 %v149
    %167 = vmatprep.subr.mxu0 0.0
    %168 = vmatpush1.msra.mxu0 %v148
    %169 = vmatprep.subr.mxu0 0.0
    %170 = vmatpush1.msra.mxu0 %v147
    %171 = vmatprep.subr.mxu0 0.0
    %172 = vmatpush1.msra.mxu0 %v146
    %173 = vmatprep.subr.mxu0 0.0
    %174 = vmatpush1.msra.mxu0 %v145
    %175 = vmatprep.subr.mxu0 0.0
    %176 = vmatpush1.msra.mxu0 %v144
    %177 = vmatprep.subr.mxu0 0.0
    %178 = vmatpush1.msra.mxu0 %v143
    %179 = vmatprep.subr.mxu0 0.0
    %180 = vmatpush1.msra.mxu0 %v142
    %181 = vmatprep.subr.mxu0 0.0
    %182 = vmatpush1.msra.mxu0 %v141
    %183 = vmatprep.subr.mxu0 0.0
    %184 = vmatpush1.msra.mxu0 %v140
    %185 = vmatprep.subr.mxu0 0.0
    %186 = vmatpush1.msra.mxu0 %v139
    %187 = vmatprep.subr.mxu0 0.0
    %188 = vmatpush1.msra.mxu0 %v138
    %189 = vmatprep.subr.mxu0 0.0
    %190 = vmatpush1.msra.mxu0 %v137
    %191 = vmatprep.subr.mxu0 0.0
    %192 = vmatpush2.msra.mxu0 0.0
    %193 = vmatprep.subr.mxu0 0.0
    %194 = vmatpush2.msra.mxu0 0.0
    %195 = vmatprep.subr.mxu0 0.0
    %196 = vmatpush2.msra.mxu0 0.0
    %197 = vmatprep.subr.mxu0 0.0
    %198 = vmatpush2.msra.mxu0 0.0
    %199 = vmatprep.subr.mxu0 0.0
    %200 = vmatpush2.msra.mxu0 0.0
    %201 = vmatprep.subr.mxu0 0.0
    %202 = vmatpush2.msra.mxu0 0.0
    %203 = vmatprep.subr.mxu0 0.0
    %204 = vmatpush2.msra.mxu0 0.0
    %205 = vmatprep.subr.mxu0 0.0
    %206 = vmatpush2.msra.mxu0 0.0
    %207 = vmatprep.subr.mxu0 0.0
    %208 = vmatpush2.msra.mxu0 0.0
    %209 = vmatprep.subr.mxu0 0.0
    %210 = vmatpush2.msra.mxu0 0.0
    %211 = vmatprep.subr.mxu0 0.0
    %212 = vmatpush2.msra.mxu0 0.0
    %213 = vmatprep.subr.mxu0 0.0
    %214 = vmatpush2.msra.mxu0 0.0
    %215 = vmatprep.subr.mxu0 0.0
    %216 = vmatpush2.msra.mxu0 0.0
    %217 = vmatprep.subr.mxu0 0.0
    %218 = vmatpush2.msra.mxu0 0.0
    %219 = vmatprep.subr.mxu0 0.0
    %220 = vmatpush2.msra.mxu0 0.0
    %221 = vmatprep.subr.mxu0 0.0
    %222 = vmatpush2.msra.mxu0 0.0
    %223 = vmatprep.mubr.f32.mxu0 0.0
    %224 = vmatmul.mubr.f32.gmra.mxu0 %v136
    %v225 = vpop.f32.mrf.mxu0
    %v226 = vadd.f32 %v157, %v225
    %v227 = vpop.f32.mrf.mxu0
    %228 = vdwg.mxu0
    %v229 = vmax.f32 %v226, 0.0
    %v230 = vand.u32 2147483647, %v226
    %v231 = vsub.f32 0.0, %v230
    %v232 = vmul.f32 %v231, 1.442695
    %v233 = vpow.pop %v232
    %v234 = vadd.f32 %v233, 1.0
    %v235 = vlog2.pop %v234
    %v236 = vmul.f32 %v235, 0.6931472
    %v237 = vmul.f32 -0.5, %v233
    %v238 = vadd.f32 %v237, 1.0
    %v239 = vmul.f32 %v238, %v233
    %v240 = vand.u32 2147483647, %v233
    %vm241 = vcmp.lt.f32.partialorder %v240, 0.0004427343
    %v242 = vsel %vm241, %v239, %v236
    %v243 = vadd.f32 %v229, %v242
    %v244 = vld [vmem:[#allocation2 + $0x8] sm:$0xff]
    %v245 = vld [vmem:[#allocation2 + $0x18] sm:$0xff]
    %v246 = vld [vmem:[#allocation2 + $0x28] sm:$0xff]
    %v247 = vld [vmem:[#allocation2 + $0x38] sm:$0xff]
    %v248 = vld [vmem:[#allocation2 + $0x48] sm:$0xff]
    %v249 = vld [vmem:[#allocation2 + $0x58] sm:$0xff]
    %v250 = vld [vmem:[#allocation2 + $0x68] sm:$0xff]
    %v251 = vld [vmem:[#allocation2 + $0x78] sm:$0xff]
    %v252 = vld [vmem:[#allocation2 + $0x88] sm:$0xff]
    %v253 = vld [vmem:[#allocation2 + $0x98] sm:$0xff]
    %v254 = vld [vmem:[#allocation2 + $0xa8] sm:$0xff]
    %v255 = vld [vmem:[#allocation2 + $0xb8] sm:$0xff]
    %v256 = vld [vmem:[#allocation2 + $0xc8] sm:$0xff]
    %v257 = vld [vmem:[#allocation2 + $0xd8] sm:$0xff]
    %v258 = vld [vmem:[#allocation2 + $0xe8] sm:$0xff]
    %v259 = vld [vmem:[#allocation2 + $0xf8] sm:$0xff]
    %v261 = vlaneseq
    %v262 = vshrl.u32 %v261, 7
    %v263 = vsub.s32 0, %v262
    %v264 = vrot.slane %v32, %v263
    %266 = vmatprep.subr.mxu0 0.0
    %267 = vmatpush1.msra.mxu0 %v259
    %268 = vmatprep.subr.mxu0 0.0
    %269 = vmatpush1.msra.mxu0 %v258
    %270 = vmatprep.subr.mxu0 0.0
    %271 = vmatpush1.msra.mxu0 %v257
    %272 = vmatprep.subr.mxu0 0.0
    %273 = vmatpush1.msra.mxu0 %v256
    %274 = vmatprep.subr.mxu0 0.0
    %275 = vmatpush1.msra.mxu0 %v255
    %276 = vmatprep.subr.mxu0 0.0
    %277 = vmatpush1.msra.mxu0 %v254
    %278 = vmatprep.subr.mxu0 0.0
    %279 = vmatpush1.msra.mxu0 %v253
    %280 = vmatprep.subr.mxu0 0.0
    %281 = vmatpush1.msra.mxu0 %v252
    %282 = vmatprep.subr.mxu0 0.0
    %283 = vmatpush1.msra.mxu0 %v251
    %284 = vmatprep.subr.mxu0 0.0
    %285 = vmatpush1.msra.mxu0 %v250
    %286 = vmatprep.subr.mxu0 0.0
    %287 = vmatpush1.msra.mxu0 %v249
    %288 = vmatprep.subr.mxu0 0.0
    %289 = vmatpush1.msra.mxu0 %v248
    %290 = vmatprep.subr.mxu0 0.0
    %291 = vmatpush1.msra.mxu0 %v247
    %292 = vmatprep.subr.mxu0 0.0
    %293 = vmatpush1.msra.mxu0 %v246
    %294 = vmatprep.subr.mxu0 0.0
    %295 = vmatpush1.msra.mxu0 %v245
    %296 = vmatprep.subr.mxu0 0.0
    %297 = vmatpush1.msra.mxu0 %v244
    %298 = vmatprep.subr.mxu0 0.0
    %299 = vmatpush2.msra.mxu0 0.0
    %300 = vmatprep.subr.mxu0 0.0
    %301 = vmatpush2.msra.mxu0 0.0
    %302 = vmatprep.subr.mxu0 0.0
    %303 = vmatpush2.msra.mxu0 0.0
    %304 = vmatprep.subr.mxu0 0.0
    %305 = vmatpush2.msra.mxu0 0.0
    %306 = vmatprep.subr.mxu0 0.0
    %307 = vmatpush2.msra.mxu0 0.0
    %308 = vmatprep.subr.mxu0 0.0
    %309 = vmatpush2.msra.mxu0 0.0
    %310 = vmatprep.subr.mxu0 0.0
    %311 = vmatpush2.msra.mxu0 0.0
    %312 = vmatprep.subr.mxu0 0.0
    %313 = vmatpush2.msra.mxu0 0.0
    %314 = vmatprep.subr.mxu0 0.0
    %315 = vmatpush2.msra.mxu0 0.0
    %316 = vmatprep.subr.mxu0 0.0
    %317 = vmatpush2.msra.mxu0 0.0
    %318 = vmatprep.subr.mxu0 0.0
    %319 = vmatpush2.msra.mxu0 0.0
    %320 = vmatprep.subr.mxu0 0.0
    %321 = vmatpush2.msra.mxu0 0.0
    %322 = vmatprep.subr.mxu0 0.0
    %323 = vmatpush2.msra.mxu0 0.0
    %324 = vmatprep.subr.mxu0 0.0
    %325 = vmatpush2.msra.mxu0 0.0
    %326 = vmatprep.subr.mxu0 0.0
    %327 = vmatpush2.msra.mxu0 0.0
    %328 = vmatprep.subr.mxu0 0.0
    %329 = vmatpush2.msra.mxu0 0.0
    %330 = vmatprep.mubr.f32.mxu0 0.0
    %331 = vmatmul.mubr.f32.gmra.mxu0 %v243
    %v332 = vpop.f32.mrf.mxu0
    %v333 = vadd.f32 %v264, %v332
    %v334 = vpop.f32.mrf.mxu0
    %335 = vdwg.mxu0
    %337 = vrot.lane.b32.xlu0 %v333, 64
    %v338 = vpop.permute.xlu0 %337
    %v341 = vlaneseq
    %v342 = vshrl.u32 %v341, 7
    %v343 = vsub.s32 0, %v342
    %v344 = vrot.slane %v34, %v343
    %v346 = vmul.f32 %v344, %v35
    %v348 = vlaneseq
    %v349 = vshrl.u32 %v348, 7
    %v350 = vsub.s32 0, %v349
    %v351 = vrot.slane %v33, %v350
    %v353 = vmul.f32 %v351, %v338
    %v354 = vmul.f32 %v353, 1.442695
    %v355 = vpow.pop %v354
    %v356 = vmul.f32 %v346, %v355
    %v357 = vadd.f32 %v333, %v356
    %358 = vst [vmem:[%s4] sm:$0xff] %v357
    // Predicated region
    $region22: #{aux_decoder_forward.1} parent=1 // pred_check
      _
    $region23: #{aux_decoder_forward.1} parent=1 // pred_check_branch
      %360 = sbr.rel (0) target = $region25
    $region24: #{aux_decoder_forward.1} parent=1 // pred_region
      _
    $region25: #{aux_decoder_forward.1} parent=1 // pred_fallthru
      _
    // Predicated region
    $region26: #{aux_decoder_forward.1} parent=1 // pred_check
      _
    $region27: #{aux_decoder_forward.1} parent=1 // pred_check_branch
      %362 = sbr.rel (0) target = $region29
    $region28: #{aux_decoder_forward.1} parent=1 // pred_region
      _
    $region29: #{aux_decoder_forward.1} parent=1 // pred_fallthru
      _
    %363 = vsyncpa [#allocation3], 1

</llo_original>
